<compile_context>
chip_gen: v7x
topology: tpu7x:2x2x1
jax: 0.10.0
libtpu: 0.0.40
codegen_flags: <defaults>
</compile_context>

<pallas_src>
import functools

import jax
import jax.numpy as jnp
from jax.experimental import pallas as pl
from jax.experimental.pallas import tpu as pltpu


def _round_up(x, m):
    return (x + m - 1) // m * m


def _sublane(dtype):
    # Sublane packing: 8 rows for 4-byte dtypes, 16 for 2-byte, 32 for 1-byte.
    return 32 // jnp.dtype(dtype).itemsize


def _tile_bytes(rows, cols, dtype):
    """VMEM bytes of one (rows, cols) tile after (sublane, 128) layout padding."""
    itemsize = jnp.dtype(dtype).itemsize
    r = _round_up(max(int(rows), 1), _sublane(dtype))
    c = _round_up(max(int(cols), 1), 128)
    return r * c * itemsize


def _vmem_capacity_bytes():
    try:
        return int(pltpu.get_tpu_info().vmem_capacity_bytes)
    except Exception:
        return 64 * 1024 * 1024  # conservative (v7x-sized) fallback


def _cola_kernel(x_ref, a_ref, b_ref, bias_ref, o_ref, h_ref, *, apply_act):
    # x_ref:    (tm, in_features)   row tile of the flattened input
    # a_ref:    (in_features, rank) full low-rank factor A (constant block)
    # b_ref:    (rank, tn)          column tile of low-rank factor B
    # bias_ref: (1, tn)             column tile of bias
    # o_ref:    (tm, tn)            output tile
    # h_ref:    (tm, rank)          VMEM scratch in the weight dtype: silu(x @ A)

    # Compute the low-rank intermediate once per row tile (j == 0); it is
    # reused for every output-column tile j (j axis stays sequential:
    # dimension_semantics for axis 1 must remain "arbitrary").
    @pl.when(pl.program_id(1) == 0)
    def _():
        h = jnp.dot(x_ref[...], a_ref[...], preferred_element_type=jnp.float32)
        if apply_act:                        # trace-time flag (lr_act / silu)
            h = h * jax.nn.sigmoid(h)        # SiLU in f32
        h_ref[...] = h.astype(h_ref.dtype)   # single cast; native MXU operand

    out = jnp.dot(h_ref[...], b_ref[...], preferred_element_type=jnp.float32)
    out = out + bias_ref[...].astype(jnp.float32)  # (1, tn) broadcast over rows
    o_ref[...] = out.astype(o_ref.dtype)


@functools.partial(jax.jit, static_argnames=("tm", "tn", "lr_act"))
def cola_forward(x, cola_a, cola_b, bias=None, *, tm=512, tn=512, lr_act=True):
    """x: (B, T, in_features) -> (B, T, out_features) = silu(x @ A) @ B + bias."""
    B, T, in_features = x.shape
    rank, out_features = cola_b.shape
    M = B * T
    out_dtype = x.dtype
    w_dtype = cola_b.dtype

    if bias is None:  # ColaLayer(bias=False)
        bias = jnp.zeros((out_features,), dtype=w_dtype)
    bias2 = bias.reshape(1, out_features)
    x2 = x.reshape(M, in_features)           # free reshape, no padding copies

    sublane = _sublane(out_dtype)

    # ---- Row tile: target ceil(M/2) so grid_m >= 2 and both v7x TensorCores
    # get work; cap at tm (default 512 -> fewer B re-streams on v5e/v6e).
    tm_cap = max(sublane, _round_up(int(tm), sublane))
    if M >= 2 * sublane:
        tm_eff = min(tm_cap, _round_up(pl.cdiv(M, 2), sublane))
    else:
        tm_eff = min(tm_cap, M)              # single full-extent row block

    # ---- Column tile: full extent if it fits, else a multiple of 128 lanes
    # (lane-dense stores; only the edge block is masked when out % 128 != 0).
    tn_cap = max(128, _round_up(int(tn), 128))
    tn_eff = out_features if out_features <= tn_cap else tn_cap

    # ---- Fit the (double-buffered) working set into physical VMEM.
    vmem_cap = _vmem_capacity_bytes()
    budget = max(32 << 20, min(vmem_cap - (16 << 20), 100 << 20))

    def footprint(tm_, tn_):
        return (2 * _tile_bytes(tm_, in_features, x.dtype)        # x tile
                + 2 * _tile_bytes(in_features, rank, cola_a.dtype)  # A (const)
                + 2 * _tile_bytes(rank, tn_, w_dtype)             # B column tile
                + 2 * _tile_bytes(1, tn_, bias2.dtype)            # bias tile
                + 2 * _tile_bytes(tm_, tn_, out_dtype)            # output tile
                + _tile_bytes(tm_, rank, w_dtype))                # h scratch

    while footprint(tm_eff, tn_eff) > budget:
        can_m, can_n = tm_eff > sublane, tn_eff > 128
        if not (can_m or can_n):
            # TODO(synk): for huge in_features*rank on v7x, a two-pass
            # structure (H = silu(x@A) to HBM, then H@B) would be needed.
            break
        row_cost = 2 * _tile_bytes(tm_eff, in_features, x.dtype)
        col_cost = 2 * _tile_bytes(rank, tn_eff, w_dtype)
        if can_m and (row_cost >= col_cost or not can_n):
            tm_eff = max(sublane, _round_up(tm_eff // 2, sublane))
        else:
            tn_eff = max(128, _round_up(tn_eff // 2, 128))

    grid_m = pl.cdiv(M, tm_eff)
    grid_n = pl.cdiv(out_features, tn_eff)

    # Advisory cost estimate so XLA can schedule around the call.
    def _isz(a):
        return jnp.dtype(a.dtype).itemsize

    cost = pl.CostEstimate(
        flops=2 * M * rank * (in_features + out_features),
        transcendentals=(M * rank) if lr_act else 0,
        bytes_accessed=(M * in_features * _isz(x)
                        + in_features * rank * _isz(cola_a)
                        + grid_m * (rank * out_features * _isz(cola_b)
                                    + out_features * _isz(bias2))
                        + M * out_features * jnp.dtype(out_dtype).itemsize),
    )

    out2 = pl.pallas_call(
        functools.partial(_cola_kernel, apply_act=lr_act),
        out_shape=jax.ShapeDtypeStruct((M, out_features), out_dtype),
        grid_spec=pltpu.PrefetchScalarGridSpec(
            num_scalar_prefetch=0,
            grid=(grid_m, grid_n),
            in_specs=[
                # row tile of flattened input (re-fetched only when i changes)
                pl.BlockSpec((tm_eff, in_features), lambda i, j: (i, 0)),
                # full low-rank factor A (constant block -> fetched once)
                pl.BlockSpec((in_features, rank), lambda i, j: (0, 0)),
                # column tiles of B and bias
                pl.BlockSpec((rank, tn_eff), lambda i, j: (0, j)),
                pl.BlockSpec((1, tn_eff), lambda i, j: (0, j)),
            ],
            out_specs=pl.BlockSpec((tm_eff, tn_eff), lambda i, j: (i, j)),
            scratch_shapes=[pltpu.VMEM((tm_eff, rank), w_dtype)],
        ),
        compiler_params=pltpu.CompilerParams(
            # i independent across row tiles (megacore-shardable on v7x);
            # j carries the h scratch so it must stay sequential on one core.
            dimension_semantics=("parallel", "arbitrary"),
            vmem_limit_bytes=int(budget),
        ),
        cost_estimate=cost,
    )(x2, cola_a, cola_b, bias2)

    return out2.reshape(B, T, out_features)


def init_cola_params(key, in_features, out_features, rank, dtype=jnp.float32):
    """Deterministic init mirroring ColaLayer.__init__ (shapes/scales)."""
    ka, kb, kbias = jax.random.split(key, 3)
    target_sdv = (in_features + out_features) ** (-0.5)
    scale = target_sdv ** 0.5 / rank ** 0.25
    cola_a = jax.random.normal(ka, (in_features, rank), dtype) * scale
    cola_b = jax.random.normal(kb, (rank, out_features), dtype) * scale
    stdv = 1.0 / out_features ** 0.5
    bias = jax.random.uniform(kbias, (out_features,), dtype,
                              minval=-stdv, maxval=stdv)
    return cola_a, cola_b, bias


def _reference(x, cola_a, cola_b, bias, lr_act=True):
    h = jnp.matmul(x, cola_a)
    if lr_act:
        h = h * jax.nn.sigmoid(h)
    out = jnp.matmul(h, cola_b)
    if bias is not None:
        out = out + bias
    return out


if __name__ == "__main__":
    key = jax.random.PRNGKey(0)

    # Test 1: small shapes; M=16 splits into two row blocks (v7x megacore rule).
    B, T, in_f, out_f, rank = 2, 8, 32, 64, 8
    kx, kp, key = jax.random.split(key, 3)
    x = jax.random.normal(kx, (B, T, in_f), jnp.float32)
    a, b, bias = init_cola_params(kp, in_f, out_f, rank)
    y = jax.block_until_ready(cola_forward(x, a, b, bias))
    ref = _reference(x, a, b, bias)
    assert y.shape == (B, T, out_f)
    assert jnp.allclose(y, ref, atol=1e-5, rtol=1e-5)

    # Test 2: uneven tiny shapes (M=10, out=80): single full-extent blocks,
    # no padding copies anywhere.
    B2, T2, in2, out2_f, rank2 = 2, 5, 48, 80, 4
    kx2, kp2, key = jax.random.split(key, 3)
    x2 = jax.random.normal(kx2, (B2, T2, in2), jnp.float32)
    a2, b2, bias2 = init_cola_params(kp2, in2, out2_f, rank2)
    y2 = jax.block_until_ready(cola_forward(x2, a2, b2, bias2))
    ref2 = _reference(x2, a2, b2, bias2)
    assert y2.shape == (B2, T2, out2_f)
    assert jnp.allclose(y2, ref2, atol=1e-5, rtol=1e-5)

    # Test 3: multi-tile grid with ragged edge blocks on both M (210 rows,
    # tile 112) and N (384 cols, tile 256) -> exercises Pallas partial-block
    # clamping instead of wrapper-side jnp.pad.
    B3, T3, in3, out3_f, rank3 = 3, 70, 256, 384, 16
    kx3, kp3, key = jax.random.split(key, 3)
    x3 = jax.random.normal(kx3, (B3, T3, in3), jnp.float32)
    a3, b3, bias3 = init_cola_params(kp3, in3, out3_f, rank3)
    y3 = jax.block_until_ready(cola_forward(x3, a3, b3, bias3, tm=128, tn=256))
    ref3 = _reference(x3, a3, b3, bias3)
    assert y3.shape == (B3, T3, out3_f)
    # Looser tolerance: MXU matmul precision inside the kernel may differ
    # slightly from the XLA reference's default-precision dots.
    assert jnp.allclose(y3, ref3, atol=2e-3, rtol=2e-2)

    # Test 4: bias=False / lr_act=False branches of ColaLayer.
    y4 = jax.block_until_ready(cola_forward(x, a, b, None, lr_act=False))
    ref4 = _reference(x, a, b, None, lr_act=False)
    assert jnp.allclose(y4, ref4, atol=1e-5, rtol=1e-5)

    # TODO(synk): the module's forward-hook ZO-gradient / perturbation
    # machinery is host-side training logic, not part of forward(); only the
    # 'silu' entry of ACT2FN is implemented.
    print("KERNEL_OK")
</pallas_src>

<mosaic_0001>
module attributes {stable_mosaic.version = 11 : i64} {
  func.func @_cola_kernel(%arg0: i32, %arg1: i32, %arg2: memref<8x32xf32, #tpu.memory_space<vmem>>, %arg3: memref<32x8xf32, #tpu.memory_space<vmem>>, %arg4: memref<8x64xf32, #tpu.memory_space<vmem>>, %arg5: memref<1x64xf32, #tpu.memory_space<vmem>>, %arg6: memref<8x64xf32, #tpu.memory_space<vmem>>, %arg7: memref<8x8xf32, #tpu.memory_space<vmem>>) attributes {dimension_semantics = [#tpu.dimension_semantics<parallel>, #tpu.dimension_semantics<arbitrary>], iteration_bounds = array<i64: 2, 1>, scalar_prefetch = 0 : i64, scratch_operands = 1 : i64, tpu.core_type = #tpu.core_type<tc>, window_params = [{transform_indices = @transform_0, window_bounds = array<i64: 8, 32>}, {pipeline_mode = #tpu.pipeline_mode<synchronous>, transform_indices = @transform_1, window_bounds = array<i64: 32, 8>}, {transform_indices = @transform_2, window_bounds = array<i64: 8, 64>}, {transform_indices = @transform_3, window_bounds = array<i64: 1, 64>}, {transform_indices = @transform_4, window_bounds = array<i64: 8, 64>}]} {
    %c0_i32 = arith.constant 0 : i32
    %0 = arith.cmpi eq, %arg1, %c0_i32 : i32
    %1 = arith.extui %0 : i1 to i32
    %c0_i32_0 = arith.constant 0 : i32
    %2 = arith.cmpi ne, %1, %c0_i32_0 : i32
    scf.if %2 {
      %c0_8 = arith.constant 0 : index
      %c0_9 = arith.constant 0 : index
      %10 = vector.load %arg2[%c0_8, %c0_9] : memref<8x32xf32, #tpu.memory_space<vmem>>, vector<8x32xf32>
      %c0_10 = arith.constant 0 : index
      %c0_11 = arith.constant 0 : index
      %11 = vector.load %arg3[%c0_10, %c0_11] : memref<32x8xf32, #tpu.memory_space<vmem>>, vector<32x8xf32>
      %cst_12 = arith.constant dense<0.000000e+00> : vector<8x8xf32>
      %12 = tpu.matmul %10, %11, %cst_12 {dimension_numbers = #tpu.dot_dimension_numbers<[1], [0], [0], [1], [0, 0, 1, 1], [], []>} : vector<8x32xf32>, vector<32x8xf32>, vector<8x8xf32> -> vector<8x8xf32>
      %13 = arith.negf %12 : vector<8x8xf32>
      %14 = math.exp %13 : vector<8x8xf32>
      %cst_13 = arith.constant 1.000000e+00 : f32
      %15 = vector.broadcast %cst_13 : f32 to vector<8x8xf32>
      %16 = arith.addf %15, %14 : vector<8x8xf32>
      %17 = arith.divf %15, %16 : vector<8x8xf32>
      %18 = arith.mulf %12, %17 : vector<8x8xf32>
      %c0_14 = arith.constant 0 : index
      %c0_15 = arith.constant 0 : index
      %19 = vector.load %arg7[%c0_14, %c0_15] : memref<8x8xf32, #tpu.memory_space<vmem>>, vector<8x8xf32>
      tpu.vector_store %arg7[%c0_14, %c0_15], %18 {strides = array<i32>} : memref<8x8xf32, #tpu.memory_space<vmem>>, vector<8x8xf32>,
    } else {
    }
    %c0 = arith.constant 0 : index
    %c0_1 = arith.constant 0 : index
    %3 = vector.load %arg7[%c0, %c0_1] : memref<8x8xf32, #tpu.memory_space<vmem>>, vector<8x8xf32>
    %c0_2 = arith.constant 0 : index
    %c0_3 = arith.constant 0 : index
    %4 = vector.load %arg4[%c0_2, %c0_3] : memref<8x64xf32, #tpu.memory_space<vmem>>, vector<8x64xf32>
    %cst = arith.constant dense<0.000000e+00> : vector<8x64xf32>
    %5 = tpu.matmul %3, %4, %cst {dimension_numbers = #tpu.dot_dimension_numbers<[1], [0], [0], [1], [0, 0, 1, 1], [], []>} : vector<8x8xf32>, vector<8x64xf32>, vector<8x64xf32> -> vector<8x64xf32>
    %c0_4 = arith.constant 0 : index
    %c0_5 = arith.constant 0 : index
    %6 = vector.load %arg5[%c0_4, %c0_5] : memref<1x64xf32, #tpu.memory_space<vmem>>, vector<1x64xf32>
    %7 = vector.broadcast %6 : vector<1x64xf32> to vector<8x64xf32>
    %8 = arith.addf %5, %7 : vector<8x64xf32>
    %c0_6 = arith.constant 0 : index
    %c0_7 = arith.constant 0 : index
    %9 = vector.load %arg6[%c0_6, %c0_7] : memref<8x64xf32, #tpu.memory_space<vmem>>, vector<8x64xf32>
    tpu.vector_store %arg6[%c0_6, %c0_7], %8 {strides = array<i32>} : memref<8x64xf32, #tpu.memory_space<vmem>>, vector<8x64xf32>,
    return
  }
  func.func @transform_0(%arg0: i32, %arg1: i32) -> (i32, i32) {
    %c0_i32 = arith.constant 0 : i32
    %c0_i32_0 = arith.constant 0 : i32
    return %arg0, %c0_i32 : i32, i32
  }
  func.func @transform_1(%arg0: i32, %arg1: i32) -> (i32, i32) {
    %c0_i32 = arith.constant 0 : i32
    %c0_i32_0 = arith.constant 0 : i32
    %c0_i32_1 = arith.constant 0 : i32
    return %c0_i32, %c0_i32_0 : i32, i32
  }
  func.func @transform_2(%arg0: i32, %arg1: i32) -> (i32, i32) {
    %c0_i32 = arith.constant 0 : i32
    %c0_i32_0 = arith.constant 0 : i32
    return %c0_i32, %arg1 : i32, i32
  }
  func.func @transform_3(%arg0: i32, %arg1: i32) -> (i32, i32) {
    %c0_i32 = arith.constant 0 : i32
    %c0_i32_0 = arith.constant 0 : i32
    return %c0_i32, %arg1 : i32, i32
  }
  func.func @transform_4(%arg0: i32, %arg1: i32) -> (i32, i32) {
    %c0_i32 = arith.constant 0 : i32
    return %arg0, %arg1 : i32, i32
  }
}

</mosaic_0001>

<llo_original>
// kernel: cola_forward.1
$region0: #{cola_forward.1}
  #allocation0 [shape = 'u32[]', space=smem, size = 0x4, offset = 0x4, fixed_abs, tag = 'smem constant byte address 0x4 - core index']
  #allocation1 [shape = 'u32[144,128]{1,0:T(1,128)}', space=vmem, size = 0x12000, scoped, tag = 'internal scratch']
  #allocation2 [shape = 'f32[8,8]{1,0:T(8,128)}', space=vmem, size = 0x1000, scoped, tag = 'scratch operand']
  %s0 = inlined_call_operand.vmem [shape: f32[16,32], index: 0, kind: input, shape index: {}]
  %s1 = inlined_call_operand.vmem [shape: f32[32,8], index: 1, kind: input, shape index: {}]
  %s2 = inlined_call_operand.vmem [shape: f32[8,64], index: 2, kind: input, shape index: {}]
  %s3 = inlined_call_operand.vmem [shape: f32[1,64], index: 3, kind: input, shape index: {}]
  %s4 = inlined_call_operand.hbm [shape: f32[16,64], index: 4, kind: output, shape index: {}]
  %s5 = sld [smem:[#allocation0]]
  $region53: #{cola_forward.1} parent=0
    _
  %s7 = ssub.s32 1, %s5
  %s8 = scalar_select 0, %s7, %s5
  $region1: #{cola_forward.1} parent=0
    #allocation3 [shape = 'u8[8192]{0}', space=vmem, size = 0x2000, scoped, tag = 'output window, operand 0']
    #allocation4 [shape = 's32[2]{0}', space=sflag, size = 0x8, scoped, tag = 'scoped memory for cola_forward.1']
    %9 = vsyncpa [#allocation4], 0
    %s10 = scalar_lea.sflag [#allocation4], 1
    %11 = vsyncpa %s10, 0
    loop: start=0, step=1, limit=4
    $region2: #{cola_forward.1} parent=1 // loop_pre_header
      _
    $region3: #{cola_forward.1} parent=1 // loop_header
      %s13 = sphi 0, %s17
      %p14 = scmp.ge.s32.totalorder %s13, 4
      %s20 = sphi 0, %s32
      %s21 = sphi 0, %s28
      %s22 = sphi 0, %s20
      %s23 = sphi 0, %s21
      %s24 = sphi 0, %s22
      %s25 = sphi 0, %s23
      %s35 = sphi 0, %s37
      %s38 = sphi 0, %s35
      %s39 = sphi 0, %s38
      %s55 = sphi 0, %s39
      %s59 = sphi 0, %s59
      %s61 = sphi 0, %s59
      %s62 = sphi 0, %s61
      %s76 = sphi 0, %s62
      %s82 = sphi 0, %s84
      %s85 = sphi 0, %s82
      %s86 = sphi 0, %s85
      %s102 = sphi 0, %s86
      %s108 = sphi 0, %s110
      %s111 = sphi 0, %s108
      %s112 = sphi 0, %s111
      %s128 = sphi 0, %s112
      %s136 = sphi 0, %s138
      %s139 = sphi 0, %s136
      %s140 = sphi 0, %s139
      %s156 = sphi 0, %s140
    $region4: #{cola_forward.1} parent=1 // loop_header_branch
      %16 = sbr.rel (%p14) target = $region8
    $region5: #{cola_forward.1} parent=1 // loop_body
      %s18 = ssub.s32 %s13, 1
      %s19 = ssub.s32 %s13, 2
      %s26 = sadd.s32 1, %s21
      %p27 = scmp.ge.s32.totalorder %s26, 1
      %s28 = scalar_select %p27, 0, %s26
      %s29 = sadd.s32 1, %s20
      %s30 = scalar_select %p27, %s29, %s20
      %p31 = scmp.ge.s32.totalorder %s30, 2
      %s32 = scalar_select %p31, 0, %s30
      %s33 = ssub.s32 %s20, %s32
      %p34 = scmp.eq.s32.totalorder %s33, 0
      %s36 = sadd.s32 %s35, 1
      %s37 = scalar_select %p34, %s35, %s36
      %p40 = pneg %p34
      %p41 = scmp.eq.s32.totalorder %s13, 1
      %p42 = por %p40, %p41
      %p43 = scmp.ne.s32.totalorder %s35, %s38
      %p44 = scmp.eq.s32.totalorder %s13, 0
      %p45 = por %p43, %p44
      %p46 = scmp.ne.s32.totalorder %s35, %s38
      %p47 = scmp.eq.s32.totalorder %s18, 1
      %p48 = por %p46, %p47
      %p49 = scmp.ne.s32.totalorder %s38, %s39
      %p50 = scmp.eq.s32.totalorder %s18, 0
      %p51 = por %p49, %p50
      %p52 = scmp.ne.s32.totalorder %s38, %s39
      %p53 = scmp.eq.s32.totalorder %s19, 1
      %p54 = por %p52, %p53
      %p56 = scmp.ne.s32.totalorder %s39, %s55
      %p57 = scmp.eq.s32.totalorder %s19, 0
      %p58 = por %p56, %p57
      %s60 = sadd.s32 %s59, 1
      %p63 = scmp.eq.s32.totalorder %s13, 1
      %p64 = scmp.ne.s32.totalorder %s59, %s61
      %p65 = scmp.eq.s32.totalorder %s13, 0
      %p66 = por %p64, %p65
      %p67 = scmp.ne.s32.totalorder %s59, %s61
      %p68 = scmp.eq.s32.totalorder %s18, 1
      %p69 = por %p67, %p68
      %p70 = scmp.ne.s32.totalorder %s61, %s62
      %p71 = scmp.eq.s32.totalorder %s18, 0
      %p72 = por %p70, %p71
      %p73 = scmp.ne.s32.totalorder %s61, %s62
      %p74 = scmp.eq.s32.totalorder %s19, 1
      %p75 = por %p73, %p74
      %p77 = scmp.ne.s32.totalorder %s62, %s76
      %p78 = scmp.eq.s32.totalorder %s19, 0
      %p79 = por %p77, %p78
      %s80 = ssub.s32 %s21, %s28
      %p81 = scmp.eq.s32.totalorder %s80, 0
      %s83 = sadd.s32 %s82, 1
      %s84 = scalar_select %p81, %s82, %s83
      %p87 = pneg %p81
      %p88 = scmp.eq.s32.totalorder %s13, 1
      %p89 = por %p87, %p88
      %p90 = scmp.ne.s32.totalorder %s82, %s85
      %p91 = scmp.eq.s32.totalorder %s13, 0
      %p92 = por %p90, %p91
      %p93 = scmp.ne.s32.totalorder %s82, %s85
      %p94 = scmp.eq.s32.totalorder %s18, 1
      %p95 = por %p93, %p94
      %p96 = scmp.ne.s32.totalorder %s85, %s86
      %p97 = scmp.eq.s32.totalorder %s18, 0
      %p98 = por %p96, %p97
      %p99 = scmp.ne.s32.totalorder %s85, %s86
      %p100 = scmp.eq.s32.totalorder %s19, 1
      %p101 = por %p99, %p100
      %p103 = scmp.ne.s32.totalorder %s86, %s102
      %p104 = scmp.eq.s32.totalorder %s19, 0
      %p105 = por %p103, %p104
      %s106 = ssub.s32 %s21, %s28
      %p107 = scmp.eq.s32.totalorder %s106, 0
      %s109 = sadd.s32 %s108, 1
      %s110 = scalar_select %p107, %s108, %s109
      %p113 = pneg %p107
      %p114 = scmp.eq.s32.totalorder %s13, 1
      %p115 = por %p113, %p114
      %p116 = scmp.ne.s32.totalorder %s108, %s111
      %p117 = scmp.eq.s32.totalorder %s13, 0
      %p118 = por %p116, %p117
      %p119 = scmp.ne.s32.totalorder %s108, %s111
      %p120 = scmp.eq.s32.totalorder %s18, 1
      %p121 = por %p119, %p120
      %p122 = scmp.ne.s32.totalorder %s111, %s112
      %p123 = scmp.eq.s32.totalorder %s18, 0
      %p124 = por %p122, %p123
      %p125 = scmp.ne.s32.totalorder %s111, %s112
      %p126 = scmp.eq.s32.totalorder %s19, 1
      %p127 = por %p125, %p126
      %p129 = scmp.ne.s32.totalorder %s112, %s128
      %p130 = scmp.eq.s32.totalorder %s19, 0
      %p131 = por %p129, %p130
      %s132 = ssub.s32 %s20, %s32
      %s133 = ssub.s32 %s21, %s28
      %s134 = sor.u32 %s132, %s133
      %p135 = scmp.eq.s32.totalorder %s134, 0
      %s137 = sadd.s32 %s136, 1
      %s138 = scalar_select %p135, %s136, %s137
      %p141 = pneg %p135
      %p142 = scmp.eq.s32.totalorder %s13, 1
      %p143 = por %p141, %p142
      %p144 = scmp.ne.s32.totalorder %s136, %s139
      %p145 = scmp.eq.s32.totalorder %s13, 0
      %p146 = por %p144, %p145
      %p147 = scmp.ne.s32.totalorder %s136, %s139
      %p148 = scmp.eq.s32.totalorder %s18, 1
      %p149 = por %p147, %p148
      %p150 = scmp.ne.s32.totalorder %s139, %s140
      %p151 = scmp.eq.s32.totalorder %s18, 0
      %p152 = por %p150, %p151
      %p153 = scmp.ne.s32.totalorder %s139, %s140
      %p154 = scmp.eq.s32.totalorder %s19, 1
      %p155 = por %p153, %p154
      %p157 = scmp.ne.s32.totalorder %s140, %s156
      %p158 = scmp.eq.s32.totalorder %s19, 0
      %p159 = por %p157, %p158
      %p160 = scmp.le.s32.totalorder 1, %s13
      %p161 = scmp.lt.s32.totalorder %s13, 3
      %p162 = pnand %p160, %p161
      %p163 = pneg %p162
      // Predicated region
      $region9: #{cola_forward.1} parent=5 // pred_check
        _
      $region10: #{cola_forward.1} parent=5 // pred_check_branch
        %165 = sbr.rel (%p162) target = $region12
      $region11: #{cola_forward.1} parent=5 // pred_region
        %s166 = ssub.s32 %s13, 1
        // Predicated region
        $region13: #{cola_forward.1} parent=11 // pred_check
          %p167 = pneg %p72
        $region14: #{cola_forward.1} parent=11 // pred_check_branch
          %169 = sbr.rel (%p167) target = $region16
        $region15: #{cola_forward.1} parent=11 // pred_region
          _
        $region16: #{cola_forward.1} parent=11 // pred_fallthru
          _
        // Predicated region
        $region17: #{cola_forward.1} parent=11 // pred_check
          %p170 = pneg %p98
        $region18: #{cola_forward.1} parent=11 // pred_check_branch
          %172 = sbr.rel (%p170) target = $region20
        $region19: #{cola_forward.1} parent=11 // pred_region
          %p173 = scmp.lt.s32.totalorder %s23, 0
          %s174 = scalar_select %p173, %s23, 0
          %s175 = smul.addr %s174, 8
          %s176 = scalar_lea.vmem %s2, %s175
        $region20: #{cola_forward.1} parent=11 // pred_fallthru
          _
        // Predicated region
        $region21: #{cola_forward.1} parent=11 // pred_check
          %p177 = pneg %p124
        $region22: #{cola_forward.1} parent=11 // pred_check_branch
          %179 = sbr.rel (%p177) target = $region24
        $region23: #{cola_forward.1} parent=11 // pred_region
          %p180 = scmp.lt.s32.totalorder %s23, 0
          %s181 = scalar_select %p180, %s23, 0
          %s182 = scalar_lea.vmem %s3, %s181
        $region24: #{cola_forward.1} parent=11 // pred_fallthru
          _
      $region12: #{cola_forward.1} parent=5 // pred_fallthru
        _
      %p183 = scmp.lt.s32.totalorder %s13, 2
      // Predicated region
      $region25: #{cola_forward.1} parent=5 // pred_check
        %p184 = pneg %p183
      $region26: #{cola_forward.1} parent=5 // pred_check_branch
        %186 = sbr.rel (%p184) target = $region28
      $region27: #{cola_forward.1} parent=5 // pred_region
        // Predicated region
        $region29: #{cola_forward.1} parent=27 // pred_check
          %p187 = pneg %p45
        $region30: #{cola_forward.1} parent=27 // pred_check_branch
          %189 = sbr.rel (%p187) target = $region32
        $region31: #{cola_forward.1} parent=27 // pred_region
          %p190 = scmp.lt.s32.totalorder %s20, 1
          %s191 = scalar_select %p190, %s20, 1
          %s192 = smul.addr %s191, 8
          %s193 = scalar_lea.vmem %s0, %s192
        $region32: #{cola_forward.1} parent=27 // pred_fallthru
          _
      $region28: #{cola_forward.1} parent=5 // pred_fallthru
        _
      %p194 = scmp.le.s32.totalorder 1, %s13
      %p195 = scmp.lt.s32.totalorder %s13, 3
      %p196 = pnand %p194, %p195
      %p197 = pneg %p196
      // Predicated region
      $region33: #{cola_forward.1} parent=5 // pred_check
        _
      $region34: #{cola_forward.1} parent=5 // pred_check_branch
        %199 = sbr.rel (%p196) target = $region36
      $region35: #{cola_forward.1} parent=5 // pred_region
        %s200 = ssub.s32 %s13, 1
        %p201 = scmp.lt.s32.totalorder %s22, 1
        %s202 = scalar_select %p201, %s22, 1
        %s203 = smul.addr %s202, 8
        %s204 = scalar_lea.vmem %s0, %s203
        %p205 = pneg %p51
        %p206 = pneg %p48
        %p207 = pneg %p72
        %p208 = pneg %p69
        %p209 = scmp.lt.s32.totalorder %s23, 0
        %s210 = scalar_select %p209, %s23, 0
        %s211 = smul.addr %s210, 8
        %s212 = scalar_lea.vmem %s2, %s211
        %p213 = pneg %p98
        %p214 = pneg %p95
        %p215 = scmp.lt.s32.totalorder %s23, 0
        %s216 = scalar_select %p215, %s23, 0
        %s217 = scalar_lea.vmem %s3, %s216
        %p218 = pneg %p124
        %p219 = pneg %p121
        %p220 = pneg %p152
        %p221 = pneg %p149
        %s222 = sand.u32 %s139, 1
        %s223 = scalar_lea.sflag [#allocation4], %s222
        %s224 = sand.u32 %s139, 1
        %s225 = smul.addr %s224, 8
        %s226 = scalar_lea.vmem [#allocation3], %s225
        %p227 = scmp.lt.s32.totalorder %s22, 1
        %s228 = scalar_select %p227, %s22, 1
        %s229 = smul.addr %s228, 8
        %s230 = scalar_lea.vmem %s0, %s229
        %p231 = scmp.lt.s32.totalorder %s23, 0
        %s232 = scalar_select %p231, %s23, 0
        %s233 = smul.addr %s232, 8
        %s234 = scalar_lea.vmem %s2, %s233
        %p235 = scmp.lt.s32.totalorder %s23, 0
        %s236 = scalar_select %p235, %s23, 0
        %s237 = scalar_lea.vmem %s3, %s236
        %p238 = scmp.eq.s32.totalorder %s23, 0
        // Predicated region
        $region37: #{cola_forward.1} parent=35 // pred_check
          %p239 = pneg %p238
        $region38: #{cola_forward.1} parent=35 // pred_check_branch
          %241 = sbr.rel (%p239) target = $region40
        $region39: #{cola_forward.1} parent=35 // pred_region
          %v242 = vld [vmem:[%s230] sm:$0xff]
          %v243 = vld [vmem:[%s1] sm:$0xff]
          %v244 = vld [vmem:[%s1 + $0x8] sm:$0xff]
          %v245 = vld [vmem:[%s1 + $0x10] sm:$0xff]
          %v246 = vld [vmem:[%s1 + $0x18] sm:$0xff]
          %vm247 = vcmask 261120
          %v249 = vsel %vm247, %v242, 0
          %251 = vmatprep.subr.mxu0 0.0
          %252 = vmatpush1.msra.mxu0 %v243
          %253 = vmatprep.subr.mxu0 0.0
          %254 = vmatpush1.msra.mxu0 %v244
          %255 = vmatprep.subr.mxu0 0.0
          %256 = vmatpush1.msra.mxu0 %v245
          %257 = vmatprep.subr.mxu0 0.0
          %258 = vmatpush1.msra.mxu0 %v246
          %259 = vmatprep.subr.mxu0 0.0
          %260 = vmatpush1.msra.mxu0 0.0
          %261 = vmatprep.subr.mxu0 0.0
          %262 = vmatpush1.msra.mxu0 0.0
          %263 = vmatprep.subr.mxu0 0.0
          %264 = vmatpush1.msra.mxu0 0.0
          %265 = vmatprep.subr.mxu0 0.0
          %266 = vmatpush1.msra.mxu0 0.0
          %267 = vmatprep.subr.mxu0 0.0
          %268 = vmatpush1.msra.mxu0 0.0
          %269 = vmatprep.subr.mxu0 0.0
          %270 = vmatpush1.msra.mxu0 0.0
          %271 = vmatprep.subr.mxu0 0.0
          %272 = vmatpush1.msra.mxu0 0.0
          %273 = vmatprep.subr.mxu0 0.0
          %274 = vmatpush1.msra.mxu0 0.0
          %275 = vmatprep.subr.mxu0 0.0
          %276 = vmatpush1.msra.mxu0 0.0
          %277 = vmatprep.subr.mxu0 0.0
          %278 = vmatpush1.msra.mxu0 0.0
          %279 = vmatprep.subr.mxu0 0.0
          %280 = vmatpush1.msra.mxu0 0.0
          %281 = vmatprep.subr.mxu0 0.0
          %282 = vmatpush1.msra.mxu0 0.0
          %283 = vmatprep.subr.mxu0 0.0
          %284 = vmatpush1.msra.mxu0 0.0
          %285 = vmatprep.subr.mxu0 0.0
          %286 = vmatpush1.msra.mxu0 0.0
          %287 = vmatprep.subr.mxu0 0.0
          %288 = vmatpush1.msra.mxu0 0.0
          %289 = vmatprep.subr.mxu0 0.0
          %290 = vmatpush1.msra.mxu0 0.0
          %291 = vmatprep.subr.mxu0 0.0
          %292 = vmatpush1.msra.mxu0 0.0
          %293 = vmatprep.subr.mxu0 0.0
          %294 = vmatpush1.msra.mxu0 0.0
          %295 = vmatprep.subr.mxu0 0.0
          %296 = vmatpush1.msra.mxu0 0.0
          %297 = vmatprep.subr.mxu0 0.0
          %298 = vmatpush1.msra.mxu0 0.0
          %299 = vmatprep.subr.mxu0 0.0
          %300 = vmatpush1.msra.mxu0 0.0
          %301 = vmatprep.subr.mxu0 0.0
          %302 = vmatpush1.msra.mxu0 0.0
          %303 = vmatprep.subr.mxu0 0.0
          %304 = vmatpush1.msra.mxu0 0.0
          %305 = vmatprep.subr.mxu0 0.0
          %306 = vmatpush1.msra.mxu0 0.0
          %307 = vmatprep.subr.mxu0 0.0
          %308 = vmatpush1.msra.mxu0 0.0
          %309 = vmatprep.subr.mxu0 0.0
          %310 = vmatpush1.msra.mxu0 0.0
          %311 = vmatprep.subr.mxu0 0.0
          %312 = vmatpush1.msra.mxu0 0.0
          %313 = vmatprep.subr.mxu0 0.0
          %314 = vmatpush1.msra.mxu0 0.0
          %315 = vmatprep.mubr.f32.mxu0 0.0
          %316 = vmatmul.mubr.f32.gmra.mrb[0].mxu0 %v249
          %v317 = vpop.f32.mrb[0].mxu0
          %v318 = vadd.f32 0.0, %v317
          %v319 = vpop.f32.mrb[0].mxu0
          %320 = vdwg.mxu0
          %v321 = vxor.u32 %v318, 2147483648
          %v322 = vmul.f32 %v321, 1.442695
          %v323 = vpow.pop %v322
          %v324 = vadd.f32 %v323, 1.0
          %v325 = vrcp.pop %v324
          %v326 = vmul.f32 1.0, %v325
          %v327 = vmul.f32 %v318, %v326
          %vm328 = vcmask 64512
          %329 = vst.msk [vmem:[#allocation2] sm:$0xff] %vm328, %v327
        $region40: #{cola_forward.1} parent=35 // pred_fallthru
          _
        %v330 = vld [vmem:[#allocation2] sm:$0xff]
        %v331 = vld [vmem:[%s234] sm:$0xff]
        %v332 = vld [vmem:[%s237] sm:$0x1]
        %v334 = vlaneseq
        %v335 = vshrl.u32 %v334, 7
        %v336 = vsub.s32 0, %v335
        %v337 = vrot.slane %v332, %v336
        %vm339 = vcmask 64512
        %v341 = vsel %vm339, %v330, 0
        %343 = vmatprep.subr.mxu0 0.0
        %344 = vmatpush1.msra.mxu0 %v331
        %345 = vmatprep.subr.mxu0 0.0
        %346 = vmatpush1.msra.mxu0 0.0
        %347 = vmatprep.subr.mxu0 0.0
        %348 = vmatpush1.msra.mxu0 0.0
        %349 = vmatprep.subr.mxu0 0.0
        %350 = vmatpush1.msra.mxu0 0.0
        %351 = vmatprep.subr.mxu0 0.0
        %352 = vmatpush1.msra.mxu0 0.0
        %353 = vmatprep.subr.mxu0 0.0
        %354 = vmatpush1.msra.mxu0 0.0
        %355 = vmatprep.subr.mxu0 0.0
        %356 = vmatpush1.msra.mxu0 0.0
        %357 = vmatprep.subr.mxu0 0.0
        %358 = vmatpush1.msra.mxu0 0.0
        %359 = vmatprep.subr.mxu0 0.0
        %360 = vmatpush1.msra.mxu0 0.0
        %361 = vmatprep.subr.mxu0 0.0
        %362 = vmatpush1.msra.mxu0 0.0
        %363 = vmatprep.subr.mxu0 0.0
        %364 = vmatpush1.msra.mxu0 0.0
        %365 = vmatprep.subr.mxu0 0.0
        %366 = vmatpush1.msra.mxu0 0.0
        %367 = vmatprep.subr.mxu0 0.0
        %368 = vmatpush1.msra.mxu0 0.0
        %369 = vmatprep.subr.mxu0 0.0
        %370 = vmatpush1.msra.mxu0 0.0
        %371 = vmatprep.subr.mxu0 0.0
        %372 = vmatpush1.msra.mxu0 0.0
        %373 = vmatprep.subr.mxu0 0.0
        %374 = vmatpush1.msra.mxu0 0.0
        %375 = vmatprep.subr.mxu0 0.0
        %376 = vmatpush1.msra.mxu0 0.0
        %377 = vmatprep.subr.mxu0 0.0
        %378 = vmatpush1.msra.mxu0 0.0
        %379 = vmatprep.subr.mxu0 0.0
        %380 = vmatpush1.msra.mxu0 0.0
        %381 = vmatprep.subr.mxu0 0.0
        %382 = vmatpush1.msra.mxu0 0.0
        %383 = vmatprep.subr.mxu0 0.0
        %384 = vmatpush1.msra.mxu0 0.0
        %385 = vmatprep.subr.mxu0 0.0
        %386 = vmatpush1.msra.mxu0 0.0
        %387 = vmatprep.subr.mxu0 0.0
        %388 = vmatpush1.msra.mxu0 0.0
        %389 = vmatprep.subr.mxu0 0.0
        %390 = vmatpush1.msra.mxu0 0.0
        %391 = vmatprep.subr.mxu0 0.0
        %392 = vmatpush1.msra.mxu0 0.0
        %393 = vmatprep.subr.mxu0 0.0
        %394 = vmatpush1.msra.mxu0 0.0
        %395 = vmatprep.subr.mxu0 0.0
        %396 = vmatpush1.msra.mxu0 0.0
        %397 = vmatprep.subr.mxu0 0.0
        %398 = vmatpush1.msra.mxu0 0.0
        %399 = vmatprep.subr.mxu0 0.0
        %400 = vmatpush1.msra.mxu0 0.0
        %401 = vmatprep.subr.mxu0 0.0
        %402 = vmatpush1.msra.mxu0 0.0
        %403 = vmatprep.subr.mxu0 0.0
        %404 = vmatpush1.msra.mxu0 0.0
        %405 = vmatprep.subr.mxu0 0.0
        %406 = vmatpush1.msra.mxu0 0.0
        %407 = vmatprep.mubr.f32.mxu0 0.0
        %408 = vmatmul.mubr.f32.gmra.mrb[0].mxu0 %v341
        %v409 = vpop.f32.mrb[0].mxu0
        %v410 = vadd.f32 %v337, %v409
        %v411 = vpop.f32.mrb[0].mxu0
        %412 = vdwg.mxu0
        %vm413 = vcmask 523264
        %414 = vst.msk [vmem:[%s226] sm:$0xff] %vm413, %v410
        %s415 = sand.u32 %s139, 1
        %s416 = scalar_lea.sflag [#allocation4], %s415
        %s417 = sand.u32 %s139, 1
        %s418 = smul.addr %s417, 8
        %s419 = scalar_lea.vmem [#allocation3], %s418
        // Predicated region
        $region41: #{cola_forward.1} parent=35 // pred_check
          %p420 = pneg %p149
        $region42: #{cola_forward.1} parent=35 // pred_check_branch
          %422 = sbr.rel (%p420) target = $region44
        $region43: #{cola_forward.1} parent=35 // pred_region
          %s424 = ssub.s32 128, 128
          %425 = vsyncadd %s416, %s424
          %s426 = sadd.s32 %s23, %s22
          %s427 = smul.addr %s426, 128
          %s428 = scalar_lea.hbm %s4, %s427
          %s430 = sshll.u32 %s419, 4
          %s431 = int_to_ptr.vmem [resolvable:$true] %s430
          %433 = dma.vmem_to_hbm [thread:$0]  %s431, 128, %s428, %s416
        $region44: #{cola_forward.1} parent=35 // pred_fallthru
          _
      $region36: #{cola_forward.1} parent=5 // pred_fallthru
        _
      %p434 = scmp.le.s32.totalorder 2, %s13
      // Predicated region
      $region45: #{cola_forward.1} parent=5 // pred_check
        %p435 = pneg %p434
      $region46: #{cola_forward.1} parent=5 // pred_check_branch
        %437 = sbr.rel (%p435) target = $region48
      $region47: #{cola_forward.1} parent=5 // pred_region
        %s438 = ssub.s32 %s13, 2
        // Predicated region
        $region49: #{cola_forward.1} parent=47 // pred_check
          %p439 = pneg %p155
        $region50: #{cola_forward.1} parent=47 // pred_check_branch
          %441 = sbr.rel (%p439) target = $region52
        $region51: #{cola_forward.1} parent=47 // pred_region
          %s442 = sand.u32 %s140, 1
          %s443 = scalar_lea.sflag [#allocation4], %s442
          %s444 = sand.u32 %s140, 1
          %s445 = smul.addr %s444, 8
          %s446 = scalar_lea.vmem [#allocation3], %s445
          %447 = dma.done %s443, 128
        $region52: #{cola_forward.1} parent=47 // pred_fallthru
          _
      $region48: #{cola_forward.1} parent=5 // pred_fallthru
        _
    $region6: #{cola_forward.1} parent=1 // loop_footer
      %s17 = sadd.s32 1, %s13
    $region7: #{cola_forward.1} parent=1 // loop_footer_branch
      %12 = sbr.rel target = $region3
    $region8: #{cola_forward.1} parent=1 // loop_exit
      _
    %448 = vsyncpa [#allocation4], 1
    %s449 = scalar_lea.sflag [#allocation4], 1
    %450 = vsyncpa %s449, 1

</llo_original>
